<compile_context>
chip_gen: v7x
topology: tpu7x:2x2x1
jax: 0.10.0
libtpu: 0.0.40
codegen_flags: <defaults>
</compile_context>

<pallas_src>
import jax
import jax.numpy as jnp
import numpy as np
from jax.experimental import pallas as pl
from jax.experimental.pallas import tpu as pltpu


# ----------------------------------------------------------------------------
# helpers
# ----------------------------------------------------------------------------
def _round_up(x, m):
    return ((x + m - 1) // m) * m


def _pad_rows(x, n_to):
    pad = n_to - x.shape[0]
    if pad == 0:
        return x
    return jnp.pad(x, ((0, pad),) + ((0, 0),) * (x.ndim - 1))


def _qkv_tile(n, *, target=512):
    t = min(target, _round_up(n, 8))
    # keep at least 2 grid steps when possible (v7x has 2 TensorCores)
    if t >= n and n > 8:
        t = max(8, (_round_up(n, 16) // 2 // 8) * 8)
    return t


def _attn_tile(n, s, c, g, *, target=128, work_budget_bytes=24 * 1024 * 1024):
    """Pick the Kernel-B point-tile from a VMEM working budget.

    Per point: double-buffered input/output blocks (kg/vg bf16, pos, mask, q,
    out) plus the f32 intermediates (peb/val/w_exp/w3) live in the body.
    """
    blocks = s * (2 * c * 2 + 3 * 4 + 4) + 2 * c * 4
    interm = s * (3 * c + 2 * g) * 4
    per_point = 2 * blocks + interm
    t = max(8, min(target, work_budget_bytes // max(per_point, 1)))
    t = (t // 8) * 8
    t = min(t, _round_up(n, 8))
    # keep at least 2 grid steps when possible (v7x has 2 TensorCores)
    if t >= n and n > 8:
        t = max(8, (_round_up(n, 16) // 2 // 8) * 8)
    return t


# ----------------------------------------------------------------------------
# Kernel A: fused QKV projection -> single lane-dense (tn, 3C) output
# ----------------------------------------------------------------------------
def qkv_kernel(feat_ref, w_ref, aff_ref, out_ref):
    # aff rows: 0 = linear bias, 1 = folded-BN scale (ones on v columns),
    #           2 = folded-BN shift (zeros on v columns), 3 = relu mask (0 on v)
    h = jnp.dot(feat_ref[...], w_ref[...], preferred_element_type=jnp.float32)
    aff = aff_ref[...]
    h = (h + aff[0]) * aff[1] + aff[2]
    out_ref[...] = jnp.where(aff[3] > 0.0, jnp.maximum(h, 0.0), h)


def qkv_projection(feat, w_qkv, affine_qkv, *, tn, vmem_limit_bytes):
    N, C = feat.shape
    C3 = w_qkv.shape[1]
    return pl.pallas_call(
        qkv_kernel,
        out_shape=jax.ShapeDtypeStruct((N, C3), jnp.float32),
        grid=(N // tn,),
        in_specs=[
            pl.BlockSpec((tn, C), lambda i: (i, 0)),
            pl.BlockSpec((C, C3), lambda i: (0, 0)),
            pl.BlockSpec((4, C3), lambda i: (0, 0)),
        ],
        out_specs=pl.BlockSpec((tn, C3), lambda i: (i, 0)),
        compiler_params=pltpu.CompilerParams(
            dimension_semantics=("parallel",),
            vmem_limit_bytes=vmem_limit_bytes),
    )(feat, w_qkv, affine_qkv)


# ----------------------------------------------------------------------------
# Kernel B: grouped vector attention core
# ----------------------------------------------------------------------------
def gva_attn_kernel(q_ref, kg_ref, vg_ref, pos_ref, mask_ref,
                    pvec_ref, wp2_ref, ww1_ref, wvec_ref, ww2_ref, exp_ref,
                    out_ref):
    TN, S, C = kg_ref.shape
    G = ww1_ref.shape[-1]

    mask3 = mask_ref[...]                                     # (TN, S, 1) f32
    # invalid (-1) neighbors: zero their gathered key/value/relative position
    # here (moved out of the wrapper; saves three full HBM passes).
    kg3 = kg_ref[...].astype(jnp.float32) * mask3
    vg3 = vg_ref[...].astype(jnp.float32) * mask3

    pvec = pvec_ref[...]                                      # (7, C)
    pos2 = (pos_ref[...] * mask3).reshape(TN * S, 3)

    # linear_p_bias layer 1 (3 -> C): three broadcast FMAs on the VPU (a K=3
    # MXU matmul wastes the MXU), then folded-BN affine + ReLU.
    peb = (pos2[:, 0:1] * pvec[0:1, :]
           + pos2[:, 1:2] * pvec[1:2, :]
           + pos2[:, 2:3] * pvec[2:3, :]
           + pvec[3:4, :])
    peb = jnp.maximum(peb * pvec[4:5, :] + pvec[5:6, :], 0.0)
    # layer 2 (C -> C) on the MXU
    peb = jnp.dot(peb, wp2_ref[...],
                  preferred_element_type=jnp.float32) + pvec[6:7, :]
    peb3 = peb.reshape(TN, S, C)

    # relation_qk = key - query (pe_multiplier=False) + pe bias; value + pe bias
    rel3 = kg3 - q_ref[...][:, None, :] + peb3
    val3 = vg3 + peb3

    # weight_encoding: Linear(C->G) -> BN(affine) -> ReLU -> Linear(G->G)
    wvec = wvec_ref[...]                                      # (4, G)
    w = jnp.dot(rel3.reshape(TN * S, C), ww1_ref[...],
                preferred_element_type=jnp.float32) + wvec[0:1, :]
    w = jnp.maximum(w * wvec[1:2, :] + wvec[2:3, :], 0.0)
    w = jnp.dot(w, ww2_ref[...],
                preferred_element_type=jnp.float32) + wvec[3:4, :]
    w3 = w.reshape(TN, S, G)

    # softmax over the neighbor axis (dim=1); attn_drop rate is 0.0 -> identity
    w3 = jnp.exp(w3 - jnp.max(w3, axis=1, keepdims=True))
    w3 = w3 * pl.reciprocal(jnp.sum(w3, axis=1, keepdims=True), approx=True)
    w3 = w3 * mask3                                           # mask invalid

    # grouped aggregation: expand per-group weights to per-channel weights with
    # one small matmul against a constant 0/1 (G, C) matrix (no lane slicing /
    # concatenate), then a single sum over neighbors.
    w_exp = jnp.dot(w3.reshape(TN * S, G), exp_ref[...],
                    preferred_element_type=jnp.float32).reshape(TN, S, C)
    out_ref[...] = jnp.sum(val3 * w_exp, axis=1)


def grouped_vector_attention(feat, coord, reference_index, p, *, groups,
                             tn_qkv=None, tn_attn=None,
                             vmem_limit_bytes=48 * 1024 * 1024):
    # NOTE: if production C is not a multiple of 128 (PTv2 stages use 48/96/...)
    # consider padding C to the next multiple of 128 at this level; here we
    # accept the masked-lane penalty for small C.
    N, C = feat.shape
    S = reference_index.shape[1]
    G = groups
    assert C % G == 0

    if tn_qkv is None:
        tn_qkv = _qkv_tile(N)
    if tn_attn is None:
        tn_attn = _attn_tile(N, S, C, G)

    # ---- Kernel A: fused QKV projection ----
    Na = _round_up(N, tn_qkv)
    qkv = qkv_projection(_pad_rows(feat, Na), p["w_qkv"], p["affine_qkv"],
                         tn=tn_qkv, vmem_limit_bytes=vmem_limit_bytes)
    q = qkv[:N, :C]
    k = qkv[:N, C:2 * C]
    v = qkv[:N, 2 * C:]

    # ---- pointops.grouping glue (data-dependent gather), plain JAX ----
    # TODO(synk): the neighbor gather stays outside the kernel; moving it
    # in-kernel needs scalar-prefetched indices + manual per-row DMA gather.
    valid = reference_index >= 0
    safe_idx = jnp.where(valid, reference_index, 0)
    mask = valid.astype(jnp.float32)[..., None]               # (N, S, 1)
    # store the big gathered tensors as bf16 in HBM (upcast inside the kernel)
    kg = jnp.take(k, safe_idx, axis=0).astype(jnp.bfloat16)
    vg = jnp.take(v, safe_idx, axis=0).astype(jnp.bfloat16)
    pos = jnp.take(coord, safe_idx, axis=0) - coord[:, None, :]
    # (invalid-neighbor zeroing happens inside Kernel B)

    Nb = _round_up(N, tn_attn)
    q_p = _pad_rows(q, Nb)
    kg_p = _pad_rows(kg, Nb)
    vg_p = _pad_rows(vg, Nb)
    pos_p = _pad_rows(pos, Nb)
    mask_p = _pad_rows(mask, Nb)

    I = C // G
    expand = (jnp.arange(C)[None, :] // I
              == jnp.arange(G)[:, None]).astype(jnp.float32)  # (G, C)

    out = pl.pallas_call(
        gva_attn_kernel,
        out_shape=jax.ShapeDtypeStruct((Nb, C), jnp.float32),
        grid=(Nb // tn_attn,),
        in_specs=[
            pl.BlockSpec((tn_attn, C), lambda i: (i, 0)),        # q
            pl.BlockSpec((tn_attn, S, C), lambda i: (i, 0, 0)),  # grouped key (bf16)
            pl.BlockSpec((tn_attn, S, C), lambda i: (i, 0, 0)),  # grouped value (bf16)
            pl.BlockSpec((tn_attn, S, 3), lambda i: (i, 0, 0)),  # relative pos
            pl.BlockSpec((tn_attn, S, 1), lambda i: (i, 0, 0)),  # neighbor mask
            pl.BlockSpec((7, C), lambda i: (0, 0)),              # wp1 rows + bp1/psc/psh/bp2
            pl.BlockSpec((C, C), lambda i: (0, 0)),              # wp2
            pl.BlockSpec((C, G), lambda i: (0, 0)),              # ww1
            pl.BlockSpec((4, G), lambda i: (0, 0)),              # bw1/wsc/wsh/bw2
            pl.BlockSpec((G, G), lambda i: (0, 0)),              # ww2
            pl.BlockSpec((G, C), lambda i: (0, 0)),              # group->channel expansion
        ],
        out_specs=pl.BlockSpec((tn_attn, C), lambda i: (i, 0)),
        compiler_params=pltpu.CompilerParams(
            dimension_semantics=("parallel",),
            vmem_limit_bytes=vmem_limit_bytes),
    )(q_p, kg_p, vg_p, pos_p, mask_p,
      p["pvec"], p["wp2"], p["ww1"], p["wvec"], p["ww2"], expand)
    return out[:N]


# ----------------------------------------------------------------------------
# Pure-JAX reference (same math, for validation)
# ----------------------------------------------------------------------------
def reference_forward(feat, coord, ref_idx, p, groups):
    N, C = feat.shape
    q = jnp.maximum((feat @ p["w_q"] + p["b_q"]) * p["s_q"] + p["sh_q"], 0.0)
    k = jnp.maximum((feat @ p["w_k"] + p["b_k"]) * p["s_k"] + p["sh_k"], 0.0)
    v = feat @ p["w_v"] + p["b_v"]
    valid = ref_idx >= 0
    mask = valid.astype(jnp.float32)
    safe = jnp.where(valid, ref_idx, 0)
    kg = k[safe] * mask[..., None]
    vg = v[safe] * mask[..., None]
    pos = (coord[safe] - coord[:, None, :]) * mask[..., None]
    peb = jnp.maximum((pos @ p["wp1"] + p["bp1"]) * p["psc"] + p["psh"], 0.0)
    peb = peb @ p["wp2"] + p["bp2"]
    rel = kg - q[:, None, :] + peb
    val = vg + peb
    w = jnp.maximum((rel @ p["ww1"] + p["bw1"]) * p["wsc"] + p["wsh"], 0.0)
    w = w @ p["ww2"] + p["bw2"]
    w = jax.nn.softmax(w, axis=1) * mask[..., None]
    S = ref_idx.shape[1]
    val4 = val.reshape(N, S, groups, C // groups)
    return jnp.einsum("nsgi,nsg->ngi", val4, w).reshape(N, C)


# ----------------------------------------------------------------------------
# Deterministic parameters (inference-mode BN folded to affine) + packing
# ----------------------------------------------------------------------------
def make_params(key, C, G):
    ks = jax.random.split(key, 18)

    def lin(k, shape):
        return 0.1 * jax.random.normal(k, shape, jnp.float32)

    def bn_affine(k, dim):
        kg_, kb, km, kv = jax.random.split(k, 4)
        gamma = 1.0 + 0.1 * jax.random.normal(kg_, (dim,), jnp.float32)
        beta = 0.1 * jax.random.normal(kb, (dim,), jnp.float32)
        mean = 0.1 * jax.random.normal(km, (dim,), jnp.float32)
        var = 1.0 + 0.2 * jax.random.uniform(kv, (dim,), jnp.float32)
        scale = gamma / jnp.sqrt(var + 1e-5)
        shift = beta - mean * scale
        return scale, shift

    p = {
        "w_q": lin(ks[0], (C, C)), "b_q": lin(ks[1], (C,)),
        "w_k": lin(ks[2], (C, C)), "b_k": lin(ks[3], (C,)),
        "w_v": lin(ks[4], (C, C)), "b_v": lin(ks[5], (C,)),
        "wp1": lin(ks[8], (3, C)), "bp1": lin(ks[9], (C,)),
        "wp2": lin(ks[10], (C, C)), "bp2": lin(ks[11], (C,)),
        "ww1": lin(ks[12], (C, G)), "bw1": lin(ks[13], (G,)),
        "ww2": lin(ks[14], (G, G)), "bw2": lin(ks[15], (G,)),
    }
    p["s_q"], p["sh_q"] = bn_affine(ks[6], C)
    p["s_k"], p["sh_k"] = bn_affine(ks[7], C)
    p["psc"], p["psh"] = bn_affine(ks[16], C)
    p["wsc"], p["wsh"] = bn_affine(ks[17], G)
    return p


def pack_params(p):
    C = p["wp2"].shape[0]
    ones_c = jnp.ones((C,), jnp.float32)
    zeros_c = jnp.zeros((C,), jnp.float32)
    return {
        "w_qkv": jnp.concatenate([p["w_q"], p["w_k"], p["w_v"]], axis=1),
        "affine_qkv": jnp.stack([
            jnp.concatenate([p["b_q"], p["b_k"], p["b_v"]]),
            jnp.concatenate([p["s_q"], p["s_k"], ones_c]),
            jnp.concatenate([p["sh_q"], p["sh_k"], zeros_c]),
            jnp.concatenate([ones_c, ones_c, zeros_c]),       # relu mask (q,k only)
        ]),
        "pvec": jnp.concatenate([p["wp1"], p["bp1"][None], p["psc"][None],
                                 p["psh"][None], p["bp2"][None]], axis=0),
        "wp2": p["wp2"],
        "ww1": p["ww1"],
        "wvec": jnp.stack([p["bw1"], p["wsc"], p["wsh"], p["bw2"]]),
        "ww2": p["ww2"],
    }


if __name__ == "__main__":
    N, C, S, G = 200, 32, 8, 4   # points, embed_channels, neighbors, groups

    root = jax.random.PRNGKey(0)
    k_feat, k_coord, k_params = jax.random.split(root, 3)

    feat = jax.random.normal(k_feat, (N, C), jnp.float32)
    coord = jax.random.normal(k_coord, (N, 3), jnp.float32)

    # deterministic neighbor index table with some -1 (invalid) entries
    base = (jnp.arange(N)[:, None] * 3 + jnp.arange(S)[None, :] * 5) % N
    drop = ((jnp.arange(N)[:, None] + jnp.arange(S)[None, :]) % 5) == 0
    reference_index = jnp.where(drop, -1, base).astype(jnp.int32)

    raw_params = make_params(k_params, C, G)
    packed_params = pack_params(raw_params)

    out = grouped_vector_attention(feat, coord, reference_index, packed_params,
                                   groups=G)
    out = jax.block_until_ready(out)

    ref = reference_forward(feat, coord, reference_index, raw_params, G)
    np.testing.assert_allclose(np.asarray(out), np.asarray(ref),
                               rtol=2e-2, atol=2e-2)
    print("KERNEL_OK")
</pallas_src>

<mosaic_0001>
module attributes {stable_mosaic.version = 11 : i64} {
  func.func @qkv_kernel(%arg0: i32, %arg1: memref<104x32xf32, #tpu.memory_space<vmem>>, %arg2: memref<32x96xf32, #tpu.memory_space<vmem>>, %arg3: memref<4x96xf32, #tpu.memory_space<vmem>>, %arg4: memref<104x96xf32, #tpu.memory_space<vmem>>) attributes {dimension_semantics = [#tpu.dimension_semantics<parallel>], iteration_bounds = array<i64: 2>, scalar_prefetch = 0 : i64, scratch_operands = 0 : i64, tpu.core_type = #tpu.core_type<tc>, window_params = [{transform_indices = @transform_0, window_bounds = array<i64: 104, 32>}, {pipeline_mode = #tpu.pipeline_mode<synchronous>, transform_indices = @transform_1, window_bounds = array<i64: 32, 96>}, {pipeline_mode = #tpu.pipeline_mode<synchronous>, transform_indices = @transform_2, window_bounds = array<i64: 4, 96>}, {transform_indices = @transform_3, window_bounds = array<i64: 104, 96>}]} {
    %c0 = arith.constant 0 : index
    %c0_0 = arith.constant 0 : index
    %0 = vector.load %arg1[%c0, %c0_0] : memref<104x32xf32, #tpu.memory_space<vmem>>, vector<104x32xf32>
    %c0_1 = arith.constant 0 : index
    %c0_2 = arith.constant 0 : index
    %1 = vector.load %arg2[%c0_1, %c0_2] : memref<32x96xf32, #tpu.memory_space<vmem>>, vector<32x96xf32>
    %cst = arith.constant dense<0.000000e+00> : vector<104x96xf32>
    %2 = tpu.matmul %0, %1, %cst {dimension_numbers = #tpu.dot_dimension_numbers<[1], [0], [0], [1], [0, 0, 1, 1], [], []>} : vector<104x32xf32>, vector<32x96xf32>, vector<104x96xf32> -> vector<104x96xf32>
    %c0_3 = arith.constant 0 : index
    %c0_4 = arith.constant 0 : index
    %3 = vector.load %arg3[%c0_3, %c0_4] : memref<4x96xf32, #tpu.memory_space<vmem>>, vector<4x96xf32>
    %4 = vector.extract_strided_slice %3 {offsets = [0, 0], sizes = [1, 96], strides = [1, 1]} : vector<4x96xf32> to vector<1x96xf32>
    %5 = vector.shape_cast %4 : vector<1x96xf32> to vector<96xf32>
    %6 = vector.shape_cast %5 : vector<96xf32> to vector<1x96xf32>
    %7 = vector.broadcast %6 : vector<1x96xf32> to vector<104x96xf32>
    %8 = arith.addf %2, %7 : vector<104x96xf32>
    %9 = vector.extract_strided_slice %3 {offsets = [1, 0], sizes = [1, 96], strides = [1, 1]} : vector<4x96xf32> to vector<1x96xf32>
    %10 = vector.shape_cast %9 : vector<1x96xf32> to vector<96xf32>
    %11 = vector.shape_cast %10 : vector<96xf32> to vector<1x96xf32>
    %12 = vector.broadcast %11 : vector<1x96xf32> to vector<104x96xf32>
    %13 = arith.mulf %8, %12 : vector<104x96xf32>
    %14 = vector.extract_strided_slice %3 {offsets = [2, 0], sizes = [1, 96], strides = [1, 1]} : vector<4x96xf32> to vector<1x96xf32>
    %15 = vector.shape_cast %14 : vector<1x96xf32> to vector<96xf32>
    %16 = vector.shape_cast %15 : vector<96xf32> to vector<1x96xf32>
    %17 = vector.broadcast %16 : vector<1x96xf32> to vector<104x96xf32>
    %18 = arith.addf %13, %17 : vector<104x96xf32>
    %19 = vector.extract_strided_slice %3 {offsets = [3, 0], sizes = [1, 96], strides = [1, 1]} : vector<4x96xf32> to vector<1x96xf32>
    %20 = vector.shape_cast %19 : vector<1x96xf32> to vector<96xf32>
    %cst_5 = arith.constant 0.000000e+00 : f32
    %21 = vector.broadcast %cst_5 : f32 to vector<96xf32>
    %22 = arith.cmpf ogt, %20, %21 : vector<96xf32>
    %cst_6 = arith.constant 0.000000e+00 : f32
    %23 = vector.broadcast %cst_6 : f32 to vector<104x96xf32>
    %24 = arith.maximumf %18, %23 : vector<104x96xf32>
    %25 = vector.shape_cast %22 : vector<96xi1> to vector<1x96xi1>
    %26 = vector.broadcast %25 : vector<1x96xi1> to vector<104x96xi1>
    %27 = arith.select %26, %24, %18 : vector<104x96xi1>, vector<104x96xf32>
    %c0_7 = arith.constant 0 : index
    %c0_8 = arith.constant 0 : index
    %28 = vector.load %arg4[%c0_7, %c0_8] : memref<104x96xf32, #tpu.memory_space<vmem>>, vector<104x96xf32>
    tpu.vector_store %arg4[%c0_7, %c0_8], %27 {strides = array<i32>} : memref<104x96xf32, #tpu.memory_space<vmem>>, vector<104x96xf32>,
    return
  }
  func.func @transform_0(%arg0: i32) -> (i32, i32) {
    %c0_i32 = arith.constant 0 : i32
    %c0_i32_0 = arith.constant 0 : i32
    return %arg0, %c0_i32 : i32, i32
  }
  func.func @transform_1(%arg0: i32) -> (i32, i32) {
    %c0_i32 = arith.constant 0 : i32
    %c0_i32_0 = arith.constant 0 : i32
    %c0_i32_1 = arith.constant 0 : i32
    return %c0_i32, %c0_i32_0 : i32, i32
  }
  func.func @transform_2(%arg0: i32) -> (i32, i32) {
    %c0_i32 = arith.constant 0 : i32
    %c0_i32_0 = arith.constant 0 : i32
    %c0_i32_1 = arith.constant 0 : i32
    return %c0_i32, %c0_i32_0 : i32, i32
  }
  func.func @transform_3(%arg0: i32) -> (i32, i32) {
    %c0_i32 = arith.constant 0 : i32
    %c0_i32_0 = arith.constant 0 : i32
    return %arg0, %c0_i32 : i32, i32
  }
}

</mosaic_0001>

<llo_original>
// kernel: tpu_custom_call.1
$region0: #{tpu_custom_call.1}
  #allocation0 [shape = 'u32[]', space=smem, size = 0x4, offset = 0x4, fixed_abs, tag = 'smem constant byte address 0x4 - core index']
  #allocation1 [shape = 'u32[144,128]{1,0:T(1,128)}', space=vmem, size = 0x12000, scoped, tag = 'internal scratch']
  %s0 = inlined_call_operand.vmem [shape: f32[208,32], index: 0, kind: input, shape index: {}]
  %s1 = inlined_call_operand.vmem [shape: f32[32,96], index: 1, kind: input, shape index: {}]
  %s2 = inlined_call_operand.vmem [shape: f32[4,96], index: 2, kind: input, shape index: {}]
  %s3 = inlined_call_operand.vmem [shape: f32[208,96], index: 3, kind: output, shape index: {}]
  %s4 = sld [smem:[#allocation0]]
  $region45: #{tpu_custom_call.1} parent=0
    _
  %s6 = ssub.s32 1, %s4
  %s7 = scalar_select 0, %s6, %s4
  loop: start=0, step=1, limit=4
  $region2: #{tpu_custom_call.1} parent=0 // loop_pre_header
    _
  $region3: #{tpu_custom_call.1} parent=0 // loop_header
    %s9 = sphi 0, %s13
    %p10 = scmp.ge.s32.totalorder %s9, 4
    %s19 = sphi 0, %s21
    %s22 = sphi 0, %s19
    %s23 = sphi 0, %s22
    %s39 = sphi 0, %s23
    %s43 = sphi 0, %s43
    %s45 = sphi 0, %s43
    %s46 = sphi 0, %s45
    %s60 = sphi 0, %s46
    %s64 = sphi 0, %s64
    %s66 = sphi 0, %s64
    %s67 = sphi 0, %s66
    %s81 = sphi 0, %s67
    %s87 = sphi 0, %s89
    %s90 = sphi 0, %s87
    %s91 = sphi 0, %s90
    %s107 = sphi 0, %s91
  $region4: #{tpu_custom_call.1} parent=0 // loop_header_branch
    %12 = sbr.rel (%p10) target = $region8
  $region5: #{tpu_custom_call.1} parent=0 // loop_body
    %s14 = ssub.s32 %s9, 1
    %s15 = ssub.s32 %s9, 2
    %s16 = sadd.s32 %s9, 1
    %s17 = ssub.s32 %s9, %s16
    %p18 = scmp.eq.s32.totalorder %s17, 0
    %s20 = sadd.s32 %s19, 1
    %s21 = scalar_select %p18, %s19, %s20
    %p24 = pneg %p18
    %p25 = scmp.eq.s32.totalorder %s9, 1
    %p26 = por %p24, %p25
    %p27 = scmp.ne.s32.totalorder %s19, %s22
    %p28 = scmp.eq.s32.totalorder %s9, 0
    %p29 = por %p27, %p28
    %p30 = scmp.ne.s32.totalorder %s19, %s22
    %p31 = scmp.eq.s32.totalorder %s14, 1
    %p32 = por %p30, %p31
    %p33 = scmp.ne.s32.totalorder %s22, %s23
    %p34 = scmp.eq.s32.totalorder %s14, 0
    %p35 = por %p33, %p34
    %p36 = scmp.ne.s32.totalorder %s22, %s23
    %p37 = scmp.eq.s32.totalorder %s15, 1
    %p38 = por %p36, %p37
    %p40 = scmp.ne.s32.totalorder %s23, %s39
    %p41 = scmp.eq.s32.totalorder %s15, 0
    %p42 = por %p40, %p41
    %s44 = sadd.s32 %s43, 1
    %p47 = scmp.eq.s32.totalorder %s9, 1
    %p48 = scmp.ne.s32.totalorder %s43, %s45
    %p49 = scmp.eq.s32.totalorder %s9, 0
    %p50 = por %p48, %p49
    %p51 = scmp.ne.s32.totalorder %s43, %s45
    %p52 = scmp.eq.s32.totalorder %s14, 1
    %p53 = por %p51, %p52
    %p54 = scmp.ne.s32.totalorder %s45, %s46
    %p55 = scmp.eq.s32.totalorder %s14, 0
    %p56 = por %p54, %p55
    %p57 = scmp.ne.s32.totalorder %s45, %s46
    %p58 = scmp.eq.s32.totalorder %s15, 1
    %p59 = por %p57, %p58
    %p61 = scmp.ne.s32.totalorder %s46, %s60
    %p62 = scmp.eq.s32.totalorder %s15, 0
    %p63 = por %p61, %p62
    %s65 = sadd.s32 %s64, 1
    %p68 = scmp.eq.s32.totalorder %s9, 1
    %p69 = scmp.ne.s32.totalorder %s64, %s66
    %p70 = scmp.eq.s32.totalorder %s9, 0
    %p71 = por %p69, %p70
    %p72 = scmp.ne.s32.totalorder %s64, %s66
    %p73 = scmp.eq.s32.totalorder %s14, 1
    %p74 = por %p72, %p73
    %p75 = scmp.ne.s32.totalorder %s66, %s67
    %p76 = scmp.eq.s32.totalorder %s14, 0
    %p77 = por %p75, %p76
    %p78 = scmp.ne.s32.totalorder %s66, %s67
    %p79 = scmp.eq.s32.totalorder %s15, 1
    %p80 = por %p78, %p79
    %p82 = scmp.ne.s32.totalorder %s67, %s81
    %p83 = scmp.eq.s32.totalorder %s15, 0
    %p84 = por %p82, %p83
    %s85 = ssub.s32 %s9, %s16
    %p86 = scmp.eq.s32.totalorder %s85, 0
    %s88 = sadd.s32 %s87, 1
    %s89 = scalar_select %p86, %s87, %s88
    %p92 = pneg %p86
    %p93 = scmp.eq.s32.totalorder %s9, 1
    %p94 = por %p92, %p93
    %p95 = scmp.ne.s32.totalorder %s87, %s90
    %p96 = scmp.eq.s32.totalorder %s9, 0
    %p97 = por %p95, %p96
    %p98 = scmp.ne.s32.totalorder %s87, %s90
    %p99 = scmp.eq.s32.totalorder %s14, 1
    %p100 = por %p98, %p99
    %p101 = scmp.ne.s32.totalorder %s90, %s91
    %p102 = scmp.eq.s32.totalorder %s14, 0
    %p103 = por %p101, %p102
    %p104 = scmp.ne.s32.totalorder %s90, %s91
    %p105 = scmp.eq.s32.totalorder %s15, 1
    %p106 = por %p104, %p105
    %p108 = scmp.ne.s32.totalorder %s91, %s107
    %p109 = scmp.eq.s32.totalorder %s15, 0
    %p110 = por %p108, %p109
    %p111 = scmp.le.s32.totalorder 1, %s9
    %p112 = scmp.lt.s32.totalorder %s9, 3
    %p113 = pnand %p111, %p112
    %p114 = pneg %p113
    // Predicated region
    $region9: #{tpu_custom_call.1} parent=5 // pred_check
      _
    $region10: #{tpu_custom_call.1} parent=5 // pred_check_branch
      %116 = sbr.rel (%p113) target = $region12
    $region11: #{tpu_custom_call.1} parent=5 // pred_region
      %s117 = ssub.s32 %s9, 1
      // Predicated region
      $region13: #{tpu_custom_call.1} parent=11 // pred_check
        %p118 = pneg %p56
      $region14: #{tpu_custom_call.1} parent=11 // pred_check_branch
        %120 = sbr.rel (%p118) target = $region16
      $region15: #{tpu_custom_call.1} parent=11 // pred_region
        _
      $region16: #{tpu_custom_call.1} parent=11 // pred_fallthru
        _
      // Predicated region
      $region17: #{tpu_custom_call.1} parent=11 // pred_check
        %p121 = pneg %p77
      $region18: #{tpu_custom_call.1} parent=11 // pred_check_branch
        %123 = sbr.rel (%p121) target = $region20
      $region19: #{tpu_custom_call.1} parent=11 // pred_region
        _
      $region20: #{tpu_custom_call.1} parent=11 // pred_fallthru
        _
    $region12: #{tpu_custom_call.1} parent=5 // pred_fallthru
      _
    %p124 = scmp.lt.s32.totalorder %s9, 2
    // Predicated region
    $region21: #{tpu_custom_call.1} parent=5 // pred_check
      %p125 = pneg %p124
    $region22: #{tpu_custom_call.1} parent=5 // pred_check_branch
      %127 = sbr.rel (%p125) target = $region24
    $region23: #{tpu_custom_call.1} parent=5 // pred_region
      // Predicated region
      $region25: #{tpu_custom_call.1} parent=23 // pred_check
        %p128 = pneg %p29
      $region26: #{tpu_custom_call.1} parent=23 // pred_check_branch
        %130 = sbr.rel (%p128) target = $region28
      $region27: #{tpu_custom_call.1} parent=23 // pred_region
        %s131 = smul.u32 13, %s9
        %p132 = scmp.lt.s32.totalorder %s131, 25
        %s133 = scalar_select %p132, %s131, 25
        %s134 = smul.addr %s133, 8
        %s135 = scalar_lea.vmem %s0, %s134
        %s136 = smul.u32 13, %s9
      $region28: #{tpu_custom_call.1} parent=23 // pred_fallthru
        _
    $region24: #{tpu_custom_call.1} parent=5 // pred_fallthru
      _
    %p137 = scmp.le.s32.totalorder 1, %s9
    %p138 = scmp.lt.s32.totalorder %s9, 3
    %p139 = pnand %p137, %p138
    %p140 = pneg %p139
    // Predicated region
    $region29: #{tpu_custom_call.1} parent=5 // pred_check
      _
    $region30: #{tpu_custom_call.1} parent=5 // pred_check_branch
      %142 = sbr.rel (%p139) target = $region32
    $region31: #{tpu_custom_call.1} parent=5 // pred_region
      %s143 = ssub.s32 %s9, 1
      %s144 = smul.u32 13, %s14
      %p145 = scmp.lt.s32.totalorder %s144, 25
      %s146 = scalar_select %p145, %s144, 25
      %s147 = smul.addr %s146, 8
      %s148 = scalar_lea.vmem %s0, %s147
      %p149 = pneg %p35
      %p150 = pneg %p32
      %p151 = pneg %p56
      %p152 = pneg %p53
      %p153 = pneg %p77
      %p154 = pneg %p74
      %p155 = pneg %p103
      %p156 = pneg %p100
      %s157 = smul.u32 13, %s14
      %p158 = scmp.lt.s32.totalorder %s157, 25
      %s159 = scalar_select %p158, %s157, 25
      %s160 = smul.addr %s159, 8
      %s161 = scalar_lea.vmem %s3, %s160
      %s162 = smul.u32 13, %s14
      %p163 = scmp.lt.s32.totalorder %s162, 25
      %s164 = scalar_select %p163, %s162, 25
      %s165 = smul.addr %s164, 8
      %s166 = scalar_lea.vmem %s0, %s165
      %s167 = smul.u32 13, %s14
      %s168 = smul.u32 13, %s14
      %p169 = scmp.lt.s32.totalorder %s168, 25
      %s170 = scalar_select %p169, %s168, 25
      %s171 = smul.addr %s170, 8
      %s172 = scalar_lea.vmem %s3, %s171
      %s173 = smul.u32 13, %s14
      %v174 = vld [vmem:[%s166] sm:$0xff]
      %v175 = vld [vmem:[%s166 + $0x8] sm:$0xff]
      %v176 = vld [vmem:[%s166 + $0x10] sm:$0xff]
      %v177 = vld [vmem:[%s166 + $0x18] sm:$0xff]
      %v178 = vld [vmem:[%s166 + $0x20] sm:$0xff]
      %v179 = vld [vmem:[%s166 + $0x28] sm:$0xff]
      %v180 = vld [vmem:[%s166 + $0x30] sm:$0xff]
      %v181 = vld [vmem:[%s166 + $0x38] sm:$0xff]
      %v182 = vld [vmem:[%s166 + $0x40] sm:$0xff]
      %v183 = vld [vmem:[%s166 + $0x48] sm:$0xff]
      %v184 = vld [vmem:[%s166 + $0x50] sm:$0xff]
      %v185 = vld [vmem:[%s166 + $0x58] sm:$0xff]
      %v186 = vld [vmem:[%s166 + $0x60] sm:$0xff]
      %v187 = vld [vmem:[%s1] sm:$0xff]
      %v188 = vld [vmem:[%s1 + $0x8] sm:$0xff]
      %v189 = vld [vmem:[%s1 + $0x10] sm:$0xff]
      %v190 = vld [vmem:[%s1 + $0x18] sm:$0xff]
      %v191 = vld [vmem:[%s2] sm:$0xf]
      %v192 = vlaneseq
      %v193 = vshrl.u32 %v192, 7
      %v194 = vsub.s32 0, %v193
      %v195 = vrot.slane %v191, %v194
      %vm196 = vcmask 261120
      %v198 = vsel %vm196, %v174, 0
      %v201 = vsel %vm196, %v175, 0
      %v204 = vsel %vm196, %v176, 0
      %v207 = vsel %vm196, %v177, 0
      %v210 = vsel %vm196, %v178, 0
      %v213 = vsel %vm196, %v179, 0
      %v216 = vsel %vm196, %v180, 0
      %v219 = vsel %vm196, %v181, 0
      %v222 = vsel %vm196, %v182, 0
      %v225 = vsel %vm196, %v183, 0
      %v228 = vsel %vm196, %v184, 0
      %v231 = vsel %vm196, %v185, 0
      %v234 = vsel %vm196, %v186, 0
      %236 = vmatprep.subr.mxu0 0.0
      %237 = vmatpush1.msra.mxu0 %v187
      %238 = vmatprep.subr.mxu0 0.0
      %239 = vmatpush1.msra.mxu0 %v188
      %240 = vmatprep.subr.mxu0 0.0
      %241 = vmatpush1.msra.mxu0 %v189
      %242 = vmatprep.subr.mxu0 0.0
      %243 = vmatpush1.msra.mxu0 %v190
      %244 = vmatprep.subr.mxu0 0.0
      %245 = vmatpush1.msra.mxu0 0.0
      %246 = vmatprep.subr.mxu0 0.0
      %247 = vmatpush1.msra.mxu0 0.0
      %248 = vmatprep.subr.mxu0 0.0
      %249 = vmatpush1.msra.mxu0 0.0
      %250 = vmatprep.subr.mxu0 0.0
      %251 = vmatpush1.msra.mxu0 0.0
      %252 = vmatprep.subr.mxu0 0.0
      %253 = vmatpush1.msra.mxu0 0.0
      %254 = vmatprep.subr.mxu0 0.0
      %255 = vmatpush1.msra.mxu0 0.0
      %256 = vmatprep.subr.mxu0 0.0
      %257 = vmatpush1.msra.mxu0 0.0
      %258 = vmatprep.subr.mxu0 0.0
      %259 = vmatpush1.msra.mxu0 0.0
      %260 = vmatprep.subr.mxu0 0.0
      %261 = vmatpush1.msra.mxu0 0.0
      %262 = vmatprep.subr.mxu0 0.0
      %263 = vmatpush1.msra.mxu0 0.0
      %264 = vmatprep.subr.mxu0 0.0
      %265 = vmatpush1.msra.mxu0 0.0
      %266 = vmatprep.subr.mxu0 0.0
      %267 = vmatpush1.msra.mxu0 0.0
      %268 = vmatprep.subr.mxu0 0.0
      %269 = vmatpush1.msra.mxu0 0.0
      %270 = vmatprep.subr.mxu0 0.0
      %271 = vmatpush1.msra.mxu0 0.0
      %272 = vmatprep.subr.mxu0 0.0
      %273 = vmatpush1.msra.mxu0 0.0
      %274 = vmatprep.subr.mxu0 0.0
      %275 = vmatpush1.msra.mxu0 0.0
      %276 = vmatprep.subr.mxu0 0.0
      %277 = vmatpush1.msra.mxu0 0.0
      %278 = vmatprep.subr.mxu0 0.0
      %279 = vmatpush1.msra.mxu0 0.0
      %280 = vmatprep.subr.mxu0 0.0
      %281 = vmatpush1.msra.mxu0 0.0
      %282 = vmatprep.subr.mxu0 0.0
      %283 = vmatpush1.msra.mxu0 0.0
      %284 = vmatprep.subr.mxu0 0.0
      %285 = vmatpush1.msra.mxu0 0.0
      %286 = vmatprep.subr.mxu0 0.0
      %287 = vmatpush1.msra.mxu0 0.0
      %288 = vmatprep.subr.mxu0 0.0
      %289 = vmatpush1.msra.mxu0 0.0
      %290 = vmatprep.subr.mxu0 0.0
      %291 = vmatpush1.msra.mxu0 0.0
      %292 = vmatprep.subr.mxu0 0.0
      %293 = vmatpush1.msra.mxu0 0.0
      %294 = vmatprep.subr.mxu0 0.0
      %295 = vmatpush1.msra.mxu0 0.0
      %296 = vmatprep.subr.mxu0 0.0
      %297 = vmatpush1.msra.mxu0 0.0
      %298 = vmatprep.subr.mxu0 0.0
      %299 = vmatpush1.msra.mxu0 0.0
      %300 = vmatprep.mubr.f32.mxu0 0.0
      %301 = vmatmul.mubr.f32.gmra.mrb[0].mxu0 %v198
      %v302 = vpop.f32.mrb[0].mxu0
      %v303 = vadd.f32 %v195, %v302
      %v304 = vpop.f32.mrb[0].mxu0
      %305 = vmatprep.mubr.f32.mxu0 0.0
      %306 = vmatmul.mubr.f32.gmra.mrb[0].mxu0 %v201
      %v307 = vpop.f32.mrb[0].mxu0
      %v308 = vadd.f32 %v195, %v307
      %v309 = vpop.f32.mrb[0].mxu0
      %310 = vmatprep.mubr.f32.mxu0 0.0
      %311 = vmatmul.mubr.f32.gmra.mrb[0].mxu0 %v204
      %v312 = vpop.f32.mrb[0].mxu0
      %v313 = vadd.f32 %v195, %v312
      %v314 = vpop.f32.mrb[0].mxu0
      %315 = vmatprep.mubr.f32.mxu0 0.0
      %316 = vmatmul.mubr.f32.gmra.mrb[0].mxu0 %v207
      %v317 = vpop.f32.mrb[0].mxu0
      %v318 = vadd.f32 %v195, %v317
      %v319 = vpop.f32.mrb[0].mxu0
      %320 = vmatprep.mubr.f32.mxu0 0.0
      %321 = vmatmul.mubr.f32.gmra.mrb[0].mxu0 %v210
      %v322 = vpop.f32.mrb[0].mxu0
      %v323 = vadd.f32 %v195, %v322
      %v324 = vpop.f32.mrb[0].mxu0
      %325 = vmatprep.mubr.f32.mxu0 0.0
      %326 = vmatmul.mubr.f32.gmra.mrb[0].mxu0 %v213
      %v327 = vpop.f32.mrb[0].mxu0
      %v328 = vadd.f32 %v195, %v327
      %v329 = vpop.f32.mrb[0].mxu0
      %330 = vmatprep.mubr.f32.mxu0 0.0
      %331 = vmatmul.mubr.f32.gmra.mrb[0].mxu0 %v216
      %v332 = vpop.f32.mrb[0].mxu0
      %v333 = vadd.f32 %v195, %v332
      %v334 = vpop.f32.mrb[0].mxu0
      %335 = vmatprep.mubr.f32.mxu0 0.0
      %336 = vmatmul.mubr.f32.gmra.mrb[0].mxu0 %v219
      %v337 = vpop.f32.mrb[0].mxu0
      %v338 = vadd.f32 %v195, %v337
      %v339 = vpop.f32.mrb[0].mxu0
      %340 = vmatprep.mubr.f32.mxu0 0.0
      %341 = vmatmul.mubr.f32.gmra.mrb[0].mxu0 %v222
      %v342 = vpop.f32.mrb[0].mxu0
      %v343 = vadd.f32 %v195, %v342
      %v344 = vpop.f32.mrb[0].mxu0
      %345 = vmatprep.mubr.f32.mxu0 0.0
      %346 = vmatmul.mubr.f32.gmra.mrb[0].mxu0 %v225
      %v347 = vpop.f32.mrb[0].mxu0
      %v348 = vadd.f32 %v195, %v347
      %v349 = vpop.f32.mrb[0].mxu0
      %350 = vmatprep.mubr.f32.mxu0 0.0
      %351 = vmatmul.mubr.f32.gmra.mrb[0].mxu0 %v228
      %v352 = vpop.f32.mrb[0].mxu0
      %v353 = vadd.f32 %v195, %v352
      %v354 = vpop.f32.mrb[0].mxu0
      %355 = vmatprep.mubr.f32.mxu0 0.0
      %356 = vmatmul.mubr.f32.gmra.mrb[0].mxu0 %v231
      %v357 = vpop.f32.mrb[0].mxu0
      %v358 = vadd.f32 %v195, %v357
      %v359 = vpop.f32.mrb[0].mxu0
      %360 = vmatprep.mubr.f32.mxu0 0.0
      %361 = vmatmul.mubr.f32.gmra.mrb[0].mxu0 %v234
      %v362 = vpop.f32.mrb[0].mxu0
      %v363 = vadd.f32 %v195, %v362
      %v364 = vpop.f32.mrb[0].mxu0
      %365 = vdwg.mxu0
      %v366 = vlaneseq
      %v367 = vshrl.u32 %v366, 7
      %v368 = vsub.s32 1, %v367
      %v369 = vrot.slane %v191, %v368
      %v370 = vmul.f32 %v303, %v369
      %v371 = vmul.f32 %v308, %v369
      %v372 = vmul.f32 %v313, %v369
      %v373 = vmul.f32 %v318, %v369
      %v374 = vmul.f32 %v323, %v369
      %v375 = vmul.f32 %v328, %v369
      %v376 = vmul.f32 %v333, %v369
      %v377 = vmul.f32 %v338, %v369
      %v378 = vmul.f32 %v343, %v369
      %v379 = vmul.f32 %v348, %v369
      %v380 = vmul.f32 %v353, %v369
      %v381 = vmul.f32 %v358, %v369
      %v382 = vmul.f32 %v363, %v369
      %v383 = vlaneseq
      %v384 = vshrl.u32 %v383, 7
      %v385 = vsub.s32 2, %v384
      %v386 = vrot.slane %v191, %v385
      %v387 = vadd.f32 %v370, %v386
      %v388 = vadd.f32 %v371, %v386
      %v389 = vadd.f32 %v372, %v386
      %v390 = vadd.f32 %v373, %v386
      %v391 = vadd.f32 %v374, %v386
      %v392 = vadd.f32 %v375, %v386
      %v393 = vadd.f32 %v376, %v386
      %v394 = vadd.f32 %v377, %v386
      %v395 = vadd.f32 %v378, %v386
      %v396 = vadd.f32 %v379, %v386
      %v397 = vadd.f32 %v380, %v386
      %v398 = vadd.f32 %v381, %v386
      %v399 = vadd.f32 %v382, %v386
      %vm400 = vcmp.gt.f32.partialorder %v191, 0.0
      %v401 = vmax.f32 %v387, 0.0
      %v402 = vmax.f32 %v388, 0.0
      %v403 = vmax.f32 %v389, 0.0
      %v404 = vmax.f32 %v390, 0.0
      %v405 = vmax.f32 %v391, 0.0
      %v406 = vmax.f32 %v392, 0.0
      %v407 = vmax.f32 %v393, 0.0
      %v408 = vmax.f32 %v394, 0.0
      %v409 = vmax.f32 %v395, 0.0
      %v410 = vmax.f32 %v396, 0.0
      %v411 = vmax.f32 %v397, 0.0
      %v412 = vmax.f32 %v398, 0.0
      %v413 = vmax.f32 %v399, 0.0
      %v414 = vsel %vm400, 1, 0
      %vm415 = vcmp.eq.s32.totalorder %v414, 1
      %v429 = vrot.slane %v401, 5
      %v430 = vrot.slane %v401, 6
      %v431 = vrot.slane %v401, 7
      %v432 = vrot.slane %v401, 1
      %v433 = vrot.slane %v401, 2
      %v434 = vrot.slane %v401, 3
      %v435 = vrot.slane %v401, 4
      %v436 = vrot.slane %v402, 5
      %v437 = vrot.slane %v402, 6
      %v438 = vrot.slane %v402, 7
      %v439 = vrot.slane %v402, 1
      %v440 = vrot.slane %v402, 2
      %v441 = vrot.slane %v402, 3
      %v442 = vrot.slane %v402, 4
      %v443 = vrot.slane %v403, 5
      %v444 = vrot.slane %v403, 6
      %v445 = vrot.slane %v403, 7
      %v446 = vrot.slane %v403, 1
      %v447 = vrot.slane %v403, 2
      %v448 = vrot.slane %v403, 3
      %v449 = vrot.slane %v403, 4
      %v450 = vrot.slane %v404, 5
      %v451 = vrot.slane %v404, 6
      %v452 = vrot.slane %v404, 7
      %v453 = vrot.slane %v404, 1
      %v454 = vrot.slane %v404, 2
      %v455 = vrot.slane %v404, 3
      %v456 = vrot.slane %v404, 4
      %v457 = vrot.slane %v405, 5
      %v458 = vrot.slane %v405, 6
      %v459 = vrot.slane %v405, 7
      %v460 = vrot.slane %v405, 1
      %v461 = vrot.slane %v405, 2
      %v462 = vrot.slane %v405, 3
      %v463 = vrot.slane %v405, 4
      %v464 = vrot.slane %v406, 5
      %v465 = vrot.slane %v406, 6
      %v466 = vrot.slane %v406, 7
      %v467 = vrot.slane %v406, 1
      %v468 = vrot.slane %v406, 2
      %v469 = vrot.slane %v406, 3
      %v470 = vrot.slane %v406, 4
      %v471 = vrot.slane %v407, 5
      %v472 = vrot.slane %v407, 6
      %v473 = vrot.slane %v407, 7
      %v474 = vrot.slane %v407, 1
      %v475 = vrot.slane %v407, 2
      %v476 = vrot.slane %v407, 3
      %v477 = vrot.slane %v407, 4
      %v478 = vrot.slane %v408, 5
      %v479 = vrot.slane %v408, 6
      %v480 = vrot.slane %v408, 7
      %v481 = vrot.slane %v408, 1
      %v482 = vrot.slane %v408, 2
      %v483 = vrot.slane %v408, 3
      %v484 = vrot.slane %v408, 4
      %v485 = vrot.slane %v409, 5
      %v486 = vrot.slane %v409, 6
      %v487 = vrot.slane %v409, 7
      %v488 = vrot.slane %v409, 1
      %v489 = vrot.slane %v409, 2
      %v490 = vrot.slane %v409, 3
      %v491 = vrot.slane %v409, 4
      %v492 = vrot.slane %v410, 5
      %v493 = vrot.slane %v410, 6
      %v494 = vrot.slane %v410, 7
      %v495 = vrot.slane %v410, 1
      %v496 = vrot.slane %v410, 2
      %v497 = vrot.slane %v410, 3
      %v498 = vrot.slane %v410, 4
      %v499 = vrot.slane %v411, 5
      %v500 = vrot.slane %v411, 6
      %v501 = vrot.slane %v411, 7
      %v502 = vrot.slane %v411, 1
      %v503 = vrot.slane %v411, 2
      %v504 = vrot.slane %v411, 3
      %v505 = vrot.slane %v411, 4
      %v506 = vrot.slane %v412, 5
      %v507 = vrot.slane %v412, 6
      %v508 = vrot.slane %v412, 7
      %v509 = vrot.slane %v412, 1
      %v510 = vrot.slane %v412, 2
      %v511 = vrot.slane %v412, 3
      %v512 = vrot.slane %v412, 4
      %v513 = vrot.slane %v413, 5
      %v514 = vrot.slane %v413, 6
      %v515 = vrot.slane %v413, 7
      %v516 = vrot.slane %v413, 1
      %v517 = vrot.slane %v413, 2
      %v518 = vrot.slane %v413, 3
      %v519 = vrot.slane %v413, 4
      %v637 = vrot.slane %v387, 5
      %v638 = vrot.slane %v387, 6
      %v639 = vrot.slane %v387, 7
      %v640 = vrot.slane %v387, 1
      %v641 = vrot.slane %v387, 2
      %v642 = vrot.slane %v387, 3
      %v643 = vrot.slane %v387, 4
      %v644 = vrot.slane %v388, 5
      %v645 = vrot.slane %v388, 6
      %v646 = vrot.slane %v388, 7
      %v647 = vrot.slane %v388, 1
      %v648 = vrot.slane %v388, 2
      %v649 = vrot.slane %v388, 3
      %v650 = vrot.slane %v388, 4
      %v651 = vrot.slane %v389, 5
      %v652 = vrot.slane %v389, 6
      %v653 = vrot.slane %v389, 7
      %v654 = vrot.slane %v389, 1
      %v655 = vrot.slane %v389, 2
      %v656 = vrot.slane %v389, 3
      %v657 = vrot.slane %v389, 4
      %v658 = vrot.slane %v390, 5
      %v659 = vrot.slane %v390, 6
      %v660 = vrot.slane %v390, 7
      %v661 = vrot.slane %v390, 1
      %v662 = vrot.slane %v390, 2
      %v663 = vrot.slane %v390, 3
      %v664 = vrot.slane %v390, 4
      %v665 = vrot.slane %v391, 5
      %v666 = vrot.slane %v391, 6
      %v667 = vrot.slane %v391, 7
      %v668 = vrot.slane %v391, 1
      %v669 = vrot.slane %v391, 2
      %v670 = vrot.slane %v391, 3
      %v671 = vrot.slane %v391, 4
      %v672 = vrot.slane %v392, 5
      %v673 = vrot.slane %v392, 6
      %v674 = vrot.slane %v392, 7
      %v675 = vrot.slane %v392, 1
      %v676 = vrot.slane %v392, 2
      %v677 = vrot.slane %v392, 3
      %v678 = vrot.slane %v392, 4
      %v679 = vrot.slane %v393, 5
      %v680 = vrot.slane %v393, 6
      %v681 = vrot.slane %v393, 7
      %v682 = vrot.slane %v393, 1
      %v683 = vrot.slane %v393, 2
      %v684 = vrot.slane %v393, 3
      %v685 = vrot.slane %v393, 4
      %v686 = vrot.slane %v394, 5
      %v687 = vrot.slane %v394, 6
      %v688 = vrot.slane %v394, 7
      %v689 = vrot.slane %v394, 1
      %v690 = vrot.slane %v394, 2
      %v691 = vrot.slane %v394, 3
      %v692 = vrot.slane %v394, 4
      %v693 = vrot.slane %v395, 5
      %v694 = vrot.slane %v395, 6
      %v695 = vrot.slane %v395, 7
      %v696 = vrot.slane %v395, 1
      %v697 = vrot.slane %v395, 2
      %v698 = vrot.slane %v395, 3
      %v699 = vrot.slane %v395, 4
      %v700 = vrot.slane %v396, 5
      %v701 = vrot.slane %v396, 6
      %v702 = vrot.slane %v396, 7
      %v703 = vrot.slane %v396, 1
      %v704 = vrot.slane %v396, 2
      %v705 = vrot.slane %v396, 3
      %v706 = vrot.slane %v396, 4
      %v707 = vrot.slane %v397, 5
      %v708 = vrot.slane %v397, 6
      %v709 = vrot.slane %v397, 7
      %v710 = vrot.slane %v397, 1
      %v711 = vrot.slane %v397, 2
      %v712 = vrot.slane %v397, 3
      %v713 = vrot.slane %v397, 4
      %v714 = vrot.slane %v398, 5
      %v715 = vrot.slane %v398, 6
      %v716 = vrot.slane %v398, 7
      %v717 = vrot.slane %v398, 1
      %v718 = vrot.slane %v398, 2
      %v719 = vrot.slane %v398, 3
      %v720 = vrot.slane %v398, 4
      %v721 = vrot.slane %v399, 5
      %v722 = vrot.slane %v399, 6
      %v723 = vrot.slane %v399, 7
      %v724 = vrot.slane %v399, 1
      %v725 = vrot.slane %v399, 2
      %v726 = vrot.slane %v399, 3
      %v727 = vrot.slane %v399, 4
      %v832 = vsel %vm415, %v429, %v637
      %v833 = vsel %vm415, %v430, %v638
      %v834 = vsel %vm415, %v431, %v639
      %v835 = vsel %vm415, %v401, %v387
      %v836 = vsel %vm415, %v432, %v640
      %v837 = vsel %vm415, %v433, %v641
      %v838 = vsel %vm415, %v434, %v642
      %v839 = vsel %vm415, %v435, %v643
      %v840 = vsel %vm415, %v436, %v644
      %v841 = vsel %vm415, %v437, %v645
      %v842 = vsel %vm415, %v438, %v646
      %v843 = vsel %vm415, %v402, %v388
      %v844 = vsel %vm415, %v439, %v647
      %v845 = vsel %vm415, %v440, %v648
      %v846 = vsel %vm415, %v441, %v649
      %v847 = vsel %vm415, %v442, %v650
      %v848 = vsel %vm415, %v443, %v651
      %v849 = vsel %vm415, %v444, %v652
      %v850 = vsel %vm415, %v445, %v653
      %v851 = vsel %vm415, %v403, %v389
      %v852 = vsel %vm415, %v446, %v654
      %v853 = vsel %vm415, %v447, %v655
      %v854 = vsel %vm415, %v448, %v656
      %v855 = vsel %vm415, %v449, %v657
      %v856 = vsel %vm415, %v450, %v658
      %v857 = vsel %vm415, %v451, %v659
      %v858 = vsel %vm415, %v452, %v660
      %v859 = vsel %vm415, %v404, %v390
      %v860 = vsel %vm415, %v453, %v661
      %v861 = vsel %vm415, %v454, %v662
      %v862 = vsel %vm415, %v455, %v663
      %v863 = vsel %vm415, %v456, %v664
      %v864 = vsel %vm415, %v457, %v665
      %v865 = vsel %vm415, %v458, %v666
      %v866 = vsel %vm415, %v459, %v667
      %v867 = vsel %vm415, %v405, %v391
      %v868 = vsel %vm415, %v460, %v668
      %v869 = vsel %vm415, %v461, %v669
      %v870 = vsel %vm415, %v462, %v670
      %v871 = vsel %vm415, %v463, %v671
      %v872 = vsel %vm415, %v464, %v672
      %v873 = vsel %vm415, %v465, %v673
      %v874 = vsel %vm415, %v466, %v674
      %v875 = vsel %vm415, %v406, %v392
      %v876 = vsel %vm415, %v467, %v675
      %v877 = vsel %vm415, %v468, %v676
      %v878 = vsel %vm415, %v469, %v677
      %v879 = vsel %vm415, %v470, %v678
      %v880 = vsel %vm415, %v471, %v679
      %v881 = vsel %vm415, %v472, %v680
      %v882 = vsel %vm415, %v473, %v681
      %v883 = vsel %vm415, %v407, %v393
      %v884 = vsel %vm415, %v474, %v682
      %v885 = vsel %vm415, %v475, %v683
      %v886 = vsel %vm415, %v476, %v684
      %v887 = vsel %vm415, %v477, %v685
      %v888 = vsel %vm415, %v478, %v686
      %v889 = vsel %vm415, %v479, %v687
      %v890 = vsel %vm415, %v480, %v688
      %v891 = vsel %vm415, %v408, %v394
      %v892 = vsel %vm415, %v481, %v689
      %v893 = vsel %vm415, %v482, %v690
      %v894 = vsel %vm415, %v483, %v691
      %v895 = vsel %vm415, %v484, %v692
      %v896 = vsel %vm415, %v485, %v693
      %v897 = vsel %vm415, %v486, %v694
      %v898 = vsel %vm415, %v487, %v695
      %v899 = vsel %vm415, %v409, %v395
      %v900 = vsel %vm415, %v488, %v696
      %v901 = vsel %vm415, %v489, %v697
      %v902 = vsel %vm415, %v490, %v698
      %v903 = vsel %vm415, %v491, %v699
      %v904 = vsel %vm415, %v492, %v700
      %v905 = vsel %vm415, %v493, %v701
      %v906 = vsel %vm415, %v494, %v702
      %v907 = vsel %vm415, %v410, %v396
      %v908 = vsel %vm415, %v495, %v703
      %v909 = vsel %vm415, %v496, %v704
      %v910 = vsel %vm415, %v497, %v705
      %v911 = vsel %vm415, %v498, %v706
      %v912 = vsel %vm415, %v499, %v707
      %v913 = vsel %vm415, %v500, %v708
      %v914 = vsel %vm415, %v501, %v709
      %v915 = vsel %vm415, %v411, %v397
      %v916 = vsel %vm415, %v502, %v710
      %v917 = vsel %vm415, %v503, %v711
      %v918 = vsel %vm415, %v504, %v712
      %v919 = vsel %vm415, %v505, %v713
      %v920 = vsel %vm415, %v506, %v714
      %v921 = vsel %vm415, %v507, %v715
      %v922 = vsel %vm415, %v508, %v716
      %v923 = vsel %vm415, %v412, %v398
      %v924 = vsel %vm415, %v509, %v717
      %v925 = vsel %vm415, %v510, %v718
      %v926 = vsel %vm415, %v511, %v719
      %v927 = vsel %vm415, %v512, %v720
      %v928 = vsel %vm415, %v513, %v721
      %v929 = vsel %vm415, %v514, %v722
      %v930 = vsel %vm415, %v515, %v723
      %v931 = vsel %vm415, %v413, %v399
      %v932 = vsel %vm415, %v516, %v724
      %v933 = vsel %vm415, %v517, %v725
      %v934 = vsel %vm415, %v518, %v726
      %v935 = vsel %vm415, %v519, %v727
      %v1040 = vrot.slane %v833, 7
      %vm1041 = vcmask 1044484
      %v1042 = vsel %vm1041, %v1040, %v832
      %v1043 = vrot.slane %v834, 6
      %vm1044 = vcmask 1045509
      %v1045 = vsel %vm1044, %v1043, %v1042
      %v1046 = vrot.slane %v835, 5
      %vm1047 = vcmask 1046534
      %v1048 = vsel %vm1047, %v1046, %v1045
      %v1049 = vrot.slane %v836, 4
      %vm1050 = vcmask 1047559
      %v1051 = vsel %vm1050, %v1049, %v1048
      %v1052 = vrot.slane %v837, 3
      %v1053 = vrot.slane %v838, 2
      %vm1054 = vcmask 1041409
      %v1055 = vsel %vm1054, %v1053, %v1052
      %v1056 = vrot.slane %v839, 1
      %vm1057 = vcmask 1042434
      %v1058 = vsel %vm1057, %v1056, %v1055
      %vm1059 = vcmask 1043459
      %v1060 = vsel %vm1059, %v840, %v1058
      %v1061 = vrot.slane %v841, 7
      %v1062 = vsel %vm1041, %v1061, %v1060
      %v1063 = vrot.slane %v842, 6
      %v1064 = vsel %vm1044, %v1063, %v1062
      %v1065 = vrot.slane %v843, 5
      %v1066 = vsel %vm1047, %v1065, %v1064
      %v1067 = vrot.slane %v844, 4
      %v1068 = vsel %vm1050, %v1067, %v1066
      %v1069 = vrot.slane %v845, 3
      %v1070 = vrot.slane %v846, 2
      %v1071 = vsel %vm1054, %v1070, %v1069
      %v1072 = vrot.slane %v847, 1
      %v1073 = vsel %vm1057, %v1072, %v1071
      %v1074 = vsel %vm1059, %v848, %v1073
      %v1075 = vrot.slane %v849, 7
      %v1076 = vsel %vm1041, %v1075, %v1074
      %v1077 = vrot.slane %v850, 6
      %v1078 = vsel %vm1044, %v1077, %v1076
      %v1079 = vrot.slane %v851, 5
      %v1080 = vsel %vm1047, %v1079, %v1078
      %v1081 = vrot.slane %v852, 4
      %v1082 = vsel %vm1050, %v1081, %v1080
      %v1083 = vrot.slane %v853, 3
      %v1084 = vrot.slane %v854, 2
      %v1085 = vsel %vm1054, %v1084, %v1083
      %v1086 = vrot.slane %v855, 1
      %v1087 = vsel %vm1057, %v1086, %v1085
      %v1088 = vsel %vm1059, %v856, %v1087
      %v1089 = vrot.slane %v857, 7
      %v1090 = vsel %vm1041, %v1089, %v1088
      %v1091 = vrot.slane %v858, 6
      %v1092 = vsel %vm1044, %v1091, %v1090
      %v1093 = vrot.slane %v859, 5
      %v1094 = vsel %vm1047, %v1093, %v1092
      %v1095 = vrot.slane %v860, 4
      %v1096 = vsel %vm1050, %v1095, %v1094
      %v1097 = vrot.slane %v861, 3
      %v1098 = vrot.slane %v862, 2
      %v1099 = vsel %vm1054, %v1098, %v1097
      %v1100 = vrot.slane %v863, 1
      %v1101 = vsel %vm1057, %v1100, %v1099
      %v1102 = vsel %vm1059, %v864, %v1101
      %v1103 = vrot.slane %v865, 7
      %v1104 = vsel %vm1041, %v1103, %v1102
      %v1105 = vrot.slane %v866, 6
      %v1106 = vsel %vm1044, %v1105, %v1104
      %v1107 = vrot.slane %v867, 5
      %v1108 = vsel %vm1047, %v1107, %v1106
      %v1109 = vrot.slane %v868, 4
      %v1110 = vsel %vm1050, %v1109, %v1108
      %v1111 = vrot.slane %v869, 3
      %v1112 = vrot.slane %v870, 2
      %v1113 = vsel %vm1054, %v1112, %v1111
      %v1114 = vrot.slane %v871, 1
      %v1115 = vsel %vm1057, %v1114, %v1113
      %v1116 = vsel %vm1059, %v872, %v1115
      %v1117 = vrot.slane %v873, 7
      %v1118 = vsel %vm1041, %v1117, %v1116
      %v1119 = vrot.slane %v874, 6
      %v1120 = vsel %vm1044, %v1119, %v1118
      %v1121 = vrot.slane %v875, 5
      %v1122 = vsel %vm1047, %v1121, %v1120
      %v1123 = vrot.slane %v876, 4
      %v1124 = vsel %vm1050, %v1123, %v1122
      %v1125 = vrot.slane %v877, 3
      %v1126 = vrot.slane %v878, 2
      %v1127 = vsel %vm1054, %v1126, %v1125
      %v1128 = vrot.slane %v879, 1
      %v1129 = vsel %vm1057, %v1128, %v1127
      %v1130 = vsel %vm1059, %v880, %v1129
      %v1131 = vrot.slane %v881, 7
      %v1132 = vsel %vm1041, %v1131, %v1130
      %v1133 = vrot.slane %v882, 6
      %v1134 = vsel %vm1044, %v1133, %v1132
      %v1135 = vrot.slane %v883, 5
      %v1136 = vsel %vm1047, %v1135, %v1134
      %v1137 = vrot.slane %v884, 4
      %v1138 = vsel %vm1050, %v1137, %v1136
      %v1139 = vrot.slane %v885, 3
      %v1140 = vrot.slane %v886, 2
      %v1141 = vsel %vm1054, %v1140, %v1139
      %v1142 = vrot.slane %v887, 1
      %v1143 = vsel %vm1057, %v1142, %v1141
      %v1144 = vsel %vm1059, %v888, %v1143
      %v1145 = vrot.slane %v889, 7
      %v1146 = vsel %vm1041, %v1145, %v1144
      %v1147 = vrot.slane %v890, 6
      %v1148 = vsel %vm1044, %v1147, %v1146
      %v1149 = vrot.slane %v891, 5
      %v1150 = vsel %vm1047, %v1149, %v1148
      %v1151 = vrot.slane %v892, 4
      %v1152 = vsel %vm1050, %v1151, %v1150
      %v1153 = vrot.slane %v893, 3
      %v1154 = vrot.slane %v894, 2
      %v1155 = vsel %vm1054, %v1154, %v1153
      %v1156 = vrot.slane %v895, 1
      %v1157 = vsel %vm1057, %v1156, %v1155
      %v1158 = vsel %vm1059, %v896, %v1157
      %v1159 = vrot.slane %v897, 7
      %v1160 = vsel %vm1041, %v1159, %v1158
      %v1161 = vrot.slane %v898, 6
      %v1162 = vsel %vm1044, %v1161, %v1160
      %v1163 = vrot.slane %v899, 5
      %v1164 = vsel %vm1047, %v1163, %v1162
      %v1165 = vrot.slane %v900, 4
      %v1166 = vsel %vm1050, %v1165, %v1164
      %v1167 = vrot.slane %v901, 3
      %v1168 = vrot.slane %v902, 2
      %v1169 = vsel %vm1054, %v1168, %v1167
      %v1170 = vrot.slane %v903, 1
      %v1171 = vsel %vm1057, %v1170, %v1169
      %v1172 = vsel %vm1059, %v904, %v1171
      %v1173 = vrot.slane %v905, 7
      %v1174 = vsel %vm1041, %v1173, %v1172
      %v1175 = vrot.slane %v906, 6
      %v1176 = vsel %vm1044, %v1175, %v1174
      %v1177 = vrot.slane %v907, 5
      %v1178 = vsel %vm1047, %v1177, %v1176
      %v1179 = vrot.slane %v908, 4
      %v1180 = vsel %vm1050, %v1179, %v1178
      %v1181 = vrot.slane %v909, 3
      %v1182 = vrot.slane %v910, 2
      %v1183 = vsel %vm1054, %v1182, %v1181
      %v1184 = vrot.slane %v911, 1
      %v1185 = vsel %vm1057, %v1184, %v1183
      %v1186 = vsel %vm1059, %v912, %v1185
      %v1187 = vrot.slane %v913, 7
      %v1188 = vsel %vm1041, %v1187, %v1186
      %v1189 = vrot.slane %v914, 6
      %v1190 = vsel %vm1044, %v1189, %v1188
      %v1191 = vrot.slane %v915, 5
      %v1192 = vsel %vm1047, %v1191, %v1190
      %v1193 = vrot.slane %v916, 4
      %v1194 = vsel %vm1050, %v1193, %v1192
      %v1195 = vrot.slane %v917, 3
      %v1196 = vrot.slane %v918, 2
      %v1197 = vsel %vm1054, %v1196, %v1195
      %v1198 = vrot.slane %v919, 1
      %v1199 = vsel %vm1057, %v1198, %v1197
      %v1200 = vsel %vm1059, %v920, %v1199
      %v1201 = vrot.slane %v921, 7
      %v1202 = vsel %vm1041, %v1201, %v1200
      %v1203 = vrot.slane %v922, 6
      %v1204 = vsel %vm1044, %v1203, %v1202
      %v1205 = vrot.slane %v923, 5
      %v1206 = vsel %vm1047, %v1205, %v1204
      %v1207 = vrot.slane %v924, 4
      %v1208 = vsel %vm1050, %v1207, %v1206
      %v1209 = vrot.slane %v925, 3
      %v1210 = vrot.slane %v926, 2
      %v1211 = vsel %vm1054, %v1210, %v1209
      %v1212 = vrot.slane %v927, 1
      %v1213 = vsel %vm1057, %v1212, %v1211
      %v1214 = vsel %vm1059, %v928, %v1213
      %v1215 = vrot.slane %v929, 7
      %v1216 = vsel %vm1041, %v1215, %v1214
      %v1217 = vrot.slane %v930, 6
      %v1218 = vsel %vm1044, %v1217, %v1216
      %v1219 = vrot.slane %v931, 5
      %v1220 = vsel %vm1047, %v1219, %v1218
      %v1221 = vrot.slane %v932, 4
      %v1222 = vsel %vm1050, %v1221, %v1220
      %v1223 = vrot.slane %v933, 3
      %v1224 = vrot.slane %v934, 2
      %v1225 = vsel %vm1054, %v1224, %v1223
      %v1226 = vrot.slane %v935, 1
      %v1227 = vsel %vm1057, %v1226, %v1225
      %vm1242 = vcmask 785411
      %1243 = vst.msk [vmem:[%s172 - $0x3] sm:$0xf8] %vm1242, %v1051
      %vm1244 = vcmask 785408
      %1245 = vst.msk [vmem:[%s172 + $0x5] sm:$0xff] %vm1244, %v1068
      %1246 = vst.msk [vmem:[%s172 + $0xd] sm:$0xff] %vm1244, %v1082
      %1247 = vst.msk [vmem:[%s172 + $0x15] sm:$0xff] %vm1244, %v1096
      %1248 = vst.msk [vmem:[%s172 + $0x1d] sm:$0xff] %vm1244, %v1110
      %1249 = vst.msk [vmem:[%s172 + $0x25] sm:$0xff] %vm1244, %v1124
      %1250 = vst.msk [vmem:[%s172 + $0x2d] sm:$0xff] %vm1244, %v1138
      %1251 = vst.msk [vmem:[%s172 + $0x35] sm:$0xff] %vm1244, %v1152
      %1252 = vst.msk [vmem:[%s172 + $0x3d] sm:$0xff] %vm1244, %v1166
      %1253 = vst.msk [vmem:[%s172 + $0x45] sm:$0xff] %vm1244, %v1180
      %1254 = vst.msk [vmem:[%s172 + $0x4d] sm:$0xff] %vm1244, %v1194
      %1255 = vst.msk [vmem:[%s172 + $0x55] sm:$0xff] %vm1244, %v1208
      %1256 = vst.msk [vmem:[%s172 + $0x5d] sm:$0xff] %vm1244, %v1222
      %vm1257 = vcmask 780288
      %1258 = vst.msk [vmem:[%s172 + $0x65] sm:$0x7] %vm1257, %v1227
      %s1259 = smul.u32 13, %s14
      %p1260 = scmp.lt.s32.totalorder %s1259, 25
      %s1261 = scalar_select %p1260, %s1259, 25
      %s1262 = smul.addr %s1261, 8
      %s1263 = scalar_lea.vmem %s3, %s1262
      // Predicated region
      $region33: #{tpu_custom_call.1} parent=31 // pred_check
        %p1264 = pneg %p100
      $region34: #{tpu_custom_call.1} parent=31 // pred_check_branch
        %1266 = sbr.rel (%p1264) target = $region36
      $region35: #{tpu_custom_call.1} parent=31 // pred_region
        %s1267 = smul.u32 13, %s14
      $region36: #{tpu_custom_call.1} parent=31 // pred_fallthru
        _
    $region32: #{tpu_custom_call.1} parent=5 // pred_fallthru
      _
    %p1268 = scmp.le.s32.totalorder 2, %s9
    // Predicated region
    $region37: #{tpu_custom_call.1} parent=5 // pred_check
      %p1269 = pneg %p1268
    $region38: #{tpu_custom_call.1} parent=5 // pred_check_branch
      %1271 = sbr.rel (%p1269) target = $region40
    $region39: #{tpu_custom_call.1} parent=5 // pred_region
      %s1272 = ssub.s32 %s9, 2
      // Predicated region
      $region41: #{tpu_custom_call.1} parent=39 // pred_check
        %p1273 = pneg %p106
      $region42: #{tpu_custom_call.1} parent=39 // pred_check_branch
        %1275 = sbr.rel (%p1273) target = $region44
      $region43: #{tpu_custom_call.1} parent=39 // pred_region
        %s1276 = smul.u32 13, %s15
        %p1277 = scmp.lt.s32.totalorder %s1276, 25
        %s1278 = scalar_select %p1277, %s1276, 25
        %s1279 = smul.addr %s1278, 8
        %s1280 = scalar_lea.vmem %s3, %s1279
      $region44: #{tpu_custom_call.1} parent=39 // pred_fallthru
        _
    $region40: #{tpu_custom_call.1} parent=5 // pred_fallthru
      _
  $region6: #{tpu_custom_call.1} parent=0 // loop_footer
    %s13 = sadd.s32 1, %s9
  $region7: #{tpu_custom_call.1} parent=0 // loop_footer_branch
    %8 = sbr.rel target = $region3
  $region8: #{tpu_custom_call.1} parent=0 // loop_exit
    _

</llo_original>
